<compile_context>
chip_gen: v7x
topology: tpu7x:2x2x1
jax: 0.10.0
libtpu: 0.0.40
codegen_flags: <defaults>
</compile_context>

<pallas_src>
import functools

import jax
import jax.numpy as jnp
from jax import lax
from jax.experimental import pallas as pl
from jax.experimental.pallas import tpu as pltpu


def _ce_rows_kernel(logits_ref, tgt_ref, loss_ref, *, batch_total):
    TB, C = logits_ref.shape

    logits = logits_ref[...].astype(jnp.float32)          # per-tile upcast only
    new_tgt = tgt_ref[...]                                 # (TB, 1) int32

    m = jnp.max(logits, axis=-1, keepdims=True)
    sumexp = jnp.sum(jnp.exp(logits - m), axis=-1, keepdims=True)
    lse = m + jnp.log(sumexp)

    cols = lax.broadcasted_iota(jnp.int32, (1, C), 1)      # (1, C) broadcasts
    picked = jnp.sum(jnp.where(cols == new_tgt, logits, 0.0),
                     axis=-1, keepdims=True)

    # Rows past the real batch (ragged last block) contain garbage -> select 0.
    row0 = pl.program_id(0) * TB
    rows = lax.broadcasted_iota(jnp.int32, (TB, 1), 0) + row0
    valid = rows < batch_total
    loss_ref[...] = jnp.where(valid, lse - picked, 0.0)


def _round_up(x, m):
    return (x + m - 1) // m * m


def _vmem_limit_bytes():
    # Generation-aware VMEM budget: 128 MiB physical on v5e/v6e, 64 MiB on v7x.
    try:
        info = pltpu.get_tpu_info()
        cap = int(getattr(info, "vmem_capacity_bytes", 0))
    except Exception:
        cap = 0
    if cap <= 0:
        cap = 64 * 1024 * 1024        # conservative fallback (v7x per-core VMEM)
    return int(cap * 0.7)             # headroom for compiler scratch, no spills


def _pick_tile_rows(batch, num_classes, itemsize, vmem_budget, max_rows=32768):
    # Per-row VMEM cost: double-buffered native-dtype logits block plus ~3
    # f32-sized in-kernel temporaries (upcast copy, exp, select), plus the
    # small (TB, 1) target/output double buffers.
    per_row = num_classes * (2 * itemsize + 3 * 4) + 32
    tb = vmem_budget // max(per_row, 1)
    tb = max(8, min(max_rows, int(tb)))
    tb = (tb // 8) * 8
    tb = min(tb, _round_up(batch, 8))
    # Keep at least two grid steps so the "parallel" axis can be split across
    # both v7x TensorCores (negligible extra cost on the 1-TC v5e/v6e).
    if batch > 16:
        tb = min(tb, _round_up(pl.cdiv(batch, 2), 8))
    return max(8, tb)


def disturb_label_loss(output, target, seed, *, num_classes, noisy_rate=0.1):
    """DisturbLabel forward: mean cross-entropy with randomly disturbed labels."""
    B, C = output.shape
    assert C == num_classes
    bound = (num_classes - 1.0) / float(num_classes) * noisy_rate

    itemsize = jnp.dtype(output.dtype).itemsize
    vmem_limit = _vmem_limit_bytes()
    TB = _pick_tile_rows(B, C, itemsize, vmem_limit)
    G = pl.cdiv(B, TB)
    B_pad = G * TB

    # ---- per-sample label disturbance (tiny, done wrapper-side) ----
    # TODO(synk): torch's RNG stream cannot be bit-matched; the disturbance
    # *distribution* is reproduced exactly with jax.random here.
    tgt = target.astype(jnp.int32)
    kg, kp = jax.random.split(jax.random.PRNGKey(seed))
    u_gate = jax.random.uniform(kg, (B,), dtype=jnp.float32)
    u_pick = jax.random.uniform(kp, (B,), dtype=jnp.float32)
    d = jnp.minimum((u_pick * (C - 1)).astype(jnp.int32), C - 2)
    d = jnp.where(d >= tgt, d + 1, d)                     # uniform over != tgt
    new_tgt = jnp.where(u_gate < bound, d, tgt).reshape(B, 1)
    if B_pad != B:
        # Only the tiny (B, 1) side input is padded; the (B, C) logits are
        # streamed unpadded (ragged last block masked inside the kernel).
        new_tgt = jnp.pad(new_tgt, ((0, B_pad - B), (0, 0)))

    kernel = functools.partial(_ce_rows_kernel, batch_total=B)

    cost = pl.CostEstimate(
        flops=5 * B * C,
        transcendentals=B * (C + 1),
        bytes_accessed=B * C * itemsize + B_pad * 4 + B_pad * 4)

    losses = pl.pallas_call(
        kernel,
        out_shape=jax.ShapeDtypeStruct((B_pad, 1), jnp.float32),
        grid=(G,),
        in_specs=[
            pl.BlockSpec((TB, C), lambda i: (i, 0)),      # logits (native dtype)
            pl.BlockSpec((TB, 1), lambda i: (i, 0)),      # disturbed targets
        ],
        out_specs=pl.BlockSpec((TB, 1), lambda i: (i, 0)),
        compiler_params=pltpu.CompilerParams(
            dimension_semantics=("parallel",),
            vmem_limit_bytes=vmem_limit),
        cost_estimate=cost,
    )(output, new_tgt)

    # Mean over the *full* batch; masked/padded rows contribute exactly 0.
    return jnp.sum(losses) / B


if __name__ == "__main__":
    key = jax.random.PRNGKey(0)
    k_logits, k_labels = jax.random.split(key)

    B, NUM_CLASSES = 8, 32
    output = jax.random.normal(k_logits, (B, NUM_CLASSES), dtype=jnp.float32)
    target = jax.random.randint(k_labels, (B,), 0, NUM_CLASSES, dtype=jnp.int32)

    loss = disturb_label_loss(output, target, seed=1234, num_classes=NUM_CLASSES)
    jax.block_until_ready(loss)
    print("KERNEL_OK")
</pallas_src>

<mosaic_0001>
module attributes {stable_mosaic.version = 11 : i64} {
  func.func @_ce_rows_kernel(%arg0: i32, %arg1: memref<8x32xf32, #tpu.memory_space<vmem>>, %arg2: memref<8x1xi32, #tpu.memory_space<vmem>>, %arg3: memref<8x1xf32, #tpu.memory_space<vmem>>) attributes {dimension_semantics = [#tpu.dimension_semantics<parallel>], iteration_bounds = array<i64: 1>, scalar_prefetch = 0 : i64, scratch_operands = 0 : i64, tpu.core_type = #tpu.core_type<tc>, window_params = [{transform_indices = @transform_0, window_bounds = array<i64: 8, 32>}, {transform_indices = @transform_1, window_bounds = array<i64: 8, 1>}, {transform_indices = @transform_2, window_bounds = array<i64: 8, 1>}]} {
    %c0 = arith.constant 0 : index
    %c0_0 = arith.constant 0 : index
    %0 = vector.load %arg1[%c0, %c0_0] : memref<8x32xf32, #tpu.memory_space<vmem>>, vector<8x32xf32>
    %c0_1 = arith.constant 0 : index
    %c0_2 = arith.constant 0 : index
    %1 = vector.load %arg2[%c0_1, %c0_2] : memref<8x1xi32, #tpu.memory_space<vmem>>, vector<8x1xi32>
    %cst = arith.constant dense<0xFF800000> : vector<8xf32>
    %2 = vector.multi_reduction <maximumf>, %0, %cst [1] : vector<8x32xf32> to vector<8xf32>
    %3 = vector.shape_cast %2 : vector<8xf32> to vector<8x1xf32>
    %4 = vector.broadcast %3 : vector<8x1xf32> to vector<8x32xf32>
    %5 = arith.subf %0, %4 : vector<8x32xf32>
    %6 = math.exp %5 : vector<8x32xf32>
    %cst_3 = arith.constant dense<0.000000e+00> : vector<8xf32>
    %7 = vector.multi_reduction <add>, %6, %cst_3 [1] : vector<8x32xf32> to vector<8xf32>
    %8 = vector.shape_cast %7 : vector<8xf32> to vector<8x1xf32>
    %9 = math.log %8 : vector<8x1xf32>
    %10 = arith.addf %3, %9 : vector<8x1xf32>
    %11 = tpu.iota {dimensions = array<i32: 1>} : vector<1x32xi32>
    %12 = vector.broadcast %11 : vector<1x32xi32> to vector<8x32xi32>
    %13 = vector.broadcast %1 : vector<8x1xi32> to vector<8x32xi32>
    %14 = arith.cmpi eq, %12, %13 : vector<8x32xi32>
    %cst_4 = arith.constant 0.000000e+00 : f32
    %15 = vector.broadcast %cst_4 : f32 to vector<8x32xf32>
    %16 = arith.select %14, %0, %15 : vector<8x32xi1>, vector<8x32xf32>
    %cst_5 = arith.constant dense<0.000000e+00> : vector<8xf32>
    %17 = vector.multi_reduction <add>, %16, %cst_5 [1] : vector<8x32xf32> to vector<8xf32>
    %18 = vector.shape_cast %17 : vector<8xf32> to vector<8x1xf32>
    %c8_i32 = arith.constant 8 : i32
    %19 = arith.muli %arg0, %c8_i32 : i32
    %20 = tpu.iota {dimensions = array<i32: 0>} : vector<8x1xi32>
    %21 = vector.broadcast %19 : i32 to vector<8x1xi32>
    %22 = arith.addi %20, %21 : vector<8x1xi32>
    %c8_i32_6 = arith.constant 8 : i32
    %23 = vector.broadcast %c8_i32_6 : i32 to vector<8x1xi32>
    %24 = arith.cmpi slt, %22, %23 : vector<8x1xi32>
    %25 = arith.subf %10, %18 : vector<8x1xf32>
    %cst_7 = arith.constant 0.000000e+00 : f32
    %26 = vector.broadcast %cst_7 : f32 to vector<8x1xf32>
    %27 = arith.select %24, %25, %26 : vector<8x1xi1>, vector<8x1xf32>
    %c0_8 = arith.constant 0 : index
    %c0_9 = arith.constant 0 : index
    %28 = vector.load %arg3[%c0_8, %c0_9] : memref<8x1xf32, #tpu.memory_space<vmem>>, vector<8x1xf32>
    tpu.vector_store %arg3[%c0_8, %c0_9], %27 {strides = array<i32>} : memref<8x1xf32, #tpu.memory_space<vmem>>, vector<8x1xf32>,
    return
  }
  func.func @transform_0(%arg0: i32) -> (i32, i32) {
    %c0_i32 = arith.constant 0 : i32
    %c0_i32_0 = arith.constant 0 : i32
    return %arg0, %c0_i32 : i32, i32
  }
  func.func @transform_1(%arg0: i32) -> (i32, i32) {
    %c0_i32 = arith.constant 0 : i32
    %c0_i32_0 = arith.constant 0 : i32
    return %arg0, %c0_i32 : i32, i32
  }
  func.func @transform_2(%arg0: i32) -> (i32, i32) {
    %c0_i32 = arith.constant 0 : i32
    %c0_i32_0 = arith.constant 0 : i32
    return %arg0, %c0_i32 : i32, i32
  }
}

</mosaic_0001>

<llo_original>
// kernel: tpu_custom_call.1
$region0: #{tpu_custom_call.1}
  #allocation0 [shape = 'u32[]', space=smem, size = 0x4, offset = 0x4, fixed_abs, tag = 'smem constant byte address 0x4 - core index']
  #allocation1 [shape = 'u32[144,128]{1,0:T(1,128)}', space=vmem, size = 0x12000, scoped, tag = 'internal scratch']
  %s0 = inlined_call_operand.vmem [shape: f32[8,32], index: 0, kind: input, shape index: {}]
  %s1 = inlined_call_operand.vmem [shape: s32[8,1], index: 1, kind: input, shape index: {}]
  %s2 = inlined_call_operand.vmem [shape: f32[8,1], index: 2, kind: output, shape index: {}]
  %s3 = sld [smem:[#allocation0]]
  $region18: #{tpu_custom_call.1} parent=0
    _
  %s5 = ssub.s32 1, %s3
  %s6 = scalar_select 0, %s5, %s3
  // Predicated region
  $region2: #{tpu_custom_call.1} parent=0 // pred_check
    _
  $region3: #{tpu_custom_call.1} parent=0 // pred_check_branch
    %8 = sbr.rel (0) target = $region5
  $region4: #{tpu_custom_call.1} parent=0 // pred_region
    _
  $region5: #{tpu_custom_call.1} parent=0 // pred_fallthru
    _
  // Predicated region
  $region6: #{tpu_custom_call.1} parent=0 // pred_check
    _
  $region7: #{tpu_custom_call.1} parent=0 // pred_check_branch
    %10 = sbr.rel (0) target = $region9
  $region8: #{tpu_custom_call.1} parent=0 // pred_region
    _
  $region9: #{tpu_custom_call.1} parent=0 // pred_fallthru
    _
  %v11 = vld [vmem:[%s0] sm:$0xff]
  %v12 = vld [vmem:[%s1] sm:$0xff]
  %vm13 = vcmask 261120
  %v14 = vsel %vm13, %v11, -inf
  %15 = vmax.xlane.f32.xlu0 %v14
  %v16 = vpop.xlane.xlu0 %15
  %v17 = vsub.f32 %v11, %v16
  %v18 = vmul.f32 %v17, 1.442695
  %v19 = vpow.pop %v18
  %v20 = vsel %vm13, %v19, 0.0
  %21 = vadd.xlane.f32.xlu0 %v20
  %v22 = vpop.xlane.xlu0 %21
  %v23 = vlog2.pop %v22
  %v24 = vmul.f32 %v23, 0.6931472
  %v25 = vadd.f32 %v16, %v24
  %v26 = vlaneseq
  %v27 = vand.u32 %v26, 127
  %28 = vset.pattern.permute.xlu0 0
  %29 = vperm.xlu0 %28, %v12
  %v30 = vpop.permute.xlu0 %29
  %vm31 = vcmp.eq.s32.totalorder %v27, %v30
  %v32 = vsel %vm31, %v11, 0.0
  %v33 = vsel %vm13, %v32, 0.0
  %34 = vadd.xlane.f32.xlu0 %v33
  %v35 = vpop.xlane.xlu0 %34
  %s36 = smul.u32 0, 8
  %v37 = vlaneseq
  %v38 = vshrl.u32 %v37, 7
  %v39 = vstv %s36
  %v40 = vadd.s32 %v38, %v39
  %vm41 = vcmp.lt.s32.totalorder %v40, 8
  %v42 = vsub.f32 %v25, %v35
  %v43 = vsel %vm41, %v42, 0.0
  %vm44 = vcmask 7168
  %45 = vst.msk [vmem:[%s2] sm:$0xff] %vm44, %v43
  // Predicated region
  $region10: #{tpu_custom_call.1} parent=0 // pred_check
    _
  $region11: #{tpu_custom_call.1} parent=0 // pred_check_branch
    %47 = sbr.rel (0) target = $region13
  $region12: #{tpu_custom_call.1} parent=0 // pred_region
    _
  $region13: #{tpu_custom_call.1} parent=0 // pred_fallthru
    _
  // Predicated region
  $region14: #{tpu_custom_call.1} parent=0 // pred_check
    _
  $region15: #{tpu_custom_call.1} parent=0 // pred_check_branch
    %49 = sbr.rel (0) target = $region17
  $region16: #{tpu_custom_call.1} parent=0 // pred_region
    _
  $region17: #{tpu_custom_call.1} parent=0 // pred_fallthru
    _

</llo_original>
